<compile_context>
chip_gen: v7x
topology: tpu7x:2x2x1
jax: 0.10.0
libtpu: 0.0.40
codegen_flags: <defaults>
</compile_context>

<pallas_src>
import jax
import jax.numpy as jnp
from jax import lax
from jax.experimental import pallas as pl
from jax.experimental.pallas import tpu as pltpu


def _copy_tile_kernel(x_ref, o_ref):
    # Pure tile-for-tile copy: no slicing, no casts, no vector math.
    o_ref[...] = x_ref[...]


def _round_up(n: int, m: int) -> int:
    return ((n + m - 1) // m) * m


def _round_down(n: int, m: int) -> int:
    return (n // m) * m


def _sublane_multiple(dtype) -> int:
    # Sublane packing: 8 rows for 4-byte, 16 for 2-byte, 32 for 1-byte dtypes.
    itemsize = jnp.dtype(dtype).itemsize
    if itemsize in (1, 2, 4):
        return 32 // itemsize
    return 8


def _remove_amount(kernel_size: int, causal: bool) -> int:
    if causal:
        return kernel_size - 1
    return 1 if kernel_size % 2 == 0 else 0


def same_pad(x: jax.Array, kernel_size: int, causal: bool = False,
             *, use_pallas: bool = False,
             tile_byte_budget: int = 2 * 1024 * 1024) -> jax.Array:
    """fairseq SamePad.forward for (B, C, T) inputs.

    use_pallas=False (default): lax.slice fast path — fuses into consumers.
    use_pallas=True: explicit Pallas tiled copy kernel (exercised below).
    """
    remove = _remove_amount(kernel_size, causal)
    if remove <= 0:
        return x  # identity path: nothing to compute

    B, C, T = x.shape
    T_out = T - remove
    if T_out <= 0:
        raise ValueError("remove >= T: empty output not supported")

    if not use_pallas:
        # Fast path: XLA will typically fuse this slice into the downstream
        # conv/matmul; even unfused it hits the HBM roofline with no per-tile
        # pipeline overhead.
        return lax.slice(x, (0, 0, 0), (B, C, T_out))

    # ----- Pallas tiled copy path -----
    R = B * C
    x2 = x.reshape(R, T)  # free, contiguous reshape

    itemsize = jnp.dtype(x.dtype).itemsize
    sub = _sublane_multiple(x.dtype)
    # Constant byte budget per buffer regardless of dtype (~2 MiB default).
    elems_budget = max(tile_byte_budget // itemsize, sub * 128)

    # Grow the time tile toward full T_out first (longer contiguous HBM
    # bursts, fewer DMA descriptors, at most one ragged time tile), then grow
    # the row tile with whatever budget remains.
    tt_cap = max(_round_down(elems_budget // sub, 128), 128)
    tt = min(_round_up(T_out, 128), tt_cap)
    tm_cap = max(_round_down(elems_budget // tt, sub), sub)
    tm = min(_round_up(R, sub), tm_cap)

    rows_blocks = pl.cdiv(R, tm)
    time_blocks = pl.cdiv(T_out, tt)

    # v7x megacore: ensure the leading "parallel" axis has >= 2 blocks so the
    # bandwidth-bound copy shards across both TensorCores.  Harmless (no-op)
    # on single-TC v5e/v6e.
    time_major = (rows_blocks < 2 and time_blocks >= 2)
    if time_major:
        grid = (time_blocks, rows_blocks)
        idx_map = lambda j, i: (i, j)
    else:
        grid = (rows_blocks, time_blocks)
        idx_map = lambda i, j: (i, j)

    cost = pl.CostEstimate(
        flops=0,
        transcendentals=0,
        bytes_accessed=2 * R * T_out * itemsize,
    )

    out2 = pl.pallas_call(
        _copy_tile_kernel,
        out_shape=jax.ShapeDtypeStruct((R, T_out), x.dtype),
        grid=grid,
        # Input and output share the same (row_block, time_block) addressing;
        # the grid only spans T_out so the trailing `remove` samples are never
        # written.  The last input tile may read (but never write) columns in
        # [T_out, T) — see header note.
        in_specs=[pl.BlockSpec((tm, tt), idx_map)],
        out_specs=pl.BlockSpec((tm, tt), idx_map),
        compiler_params=pltpu.CompilerParams(
            dimension_semantics=("parallel", "parallel"),
        ),
        cost_estimate=cost,
    )(x2)

    return out2.reshape(B, C, T_out)


if __name__ == "__main__":
    key = jax.random.PRNGKey(0)
    B, C, T = 2, 4, 16
    x = jax.random.normal(key, (B, C, T), dtype=jnp.float32)

    # Case 1: non-causal, even kernel_size -> remove = 1 (Pallas path)
    y1 = jax.block_until_ready(same_pad(x, kernel_size=4, causal=False,
                                        use_pallas=True))
    assert y1.shape == (B, C, T - 1)
    assert jnp.array_equal(y1, x[:, :, :-1])

    # Case 2: non-causal, odd kernel_size -> remove = 0 (identity)
    y2 = jax.block_until_ready(same_pad(x, kernel_size=5, causal=False,
                                        use_pallas=True))
    assert y2.shape == (B, C, T)
    assert jnp.array_equal(y2, x)

    # Case 3: causal, kernel_size = 3 -> remove = 2 (Pallas path)
    y3 = jax.block_until_ready(same_pad(x, kernel_size=3, causal=True,
                                        use_pallas=True))
    assert y3.shape == (B, C, T - 2)
    assert jnp.array_equal(y3, x[:, :, :-2])

    # Case 4: bf16 with a non-128-multiple time length (exercises the ragged
    # final time tile, 16-row sublane packing and dtype-scaled tile budget).
    xb = jax.random.normal(jax.random.PRNGKey(0), (2, 8, 300)).astype(jnp.bfloat16)
    y4 = jax.block_until_ready(same_pad(xb, kernel_size=6, causal=False,
                                        use_pallas=True))
    assert y4.shape == (2, 8, 299)
    assert jnp.array_equal(y4, xb[:, :, :-1])

    # Case 5: fast path (lax.slice) matches the Pallas path.
    y5 = jax.block_until_ready(same_pad(x, kernel_size=4, causal=False,
                                        use_pallas=False))
    assert jnp.array_equal(y5, y1)

    print("KERNEL_OK")
</pallas_src>

<mosaic_0001>
module attributes {stable_mosaic.version = 11 : i64} {
  func.func @_copy_tile_kernel(%arg0: i32, %arg1: i32, %arg2: memref<8x128xf32, #tpu.memory_space<vmem>>, %arg3: memref<8x128xf32, #tpu.memory_space<vmem>>) attributes {dimension_semantics = [#tpu.dimension_semantics<parallel>, #tpu.dimension_semantics<parallel>], iteration_bounds = array<i64: 1, 1>, scalar_prefetch = 0 : i64, scratch_operands = 0 : i64, tpu.core_type = #tpu.core_type<tc>, window_params = [{transform_indices = @transform_0, window_bounds = array<i64: 8, 128>}, {transform_indices = @transform_1, window_bounds = array<i64: 8, 128>}]} {
    %c0 = arith.constant 0 : index
    %c0_0 = arith.constant 0 : index
    %0 = vector.load %arg2[%c0, %c0_0] : memref<8x128xf32, #tpu.memory_space<vmem>>, vector<8x128xf32>
    %c0_1 = arith.constant 0 : index
    %c0_2 = arith.constant 0 : index
    %1 = vector.load %arg3[%c0_1, %c0_2] : memref<8x128xf32, #tpu.memory_space<vmem>>, vector<8x128xf32>
    tpu.vector_store %arg3[%c0_1, %c0_2], %0 {strides = array<i32>} : memref<8x128xf32, #tpu.memory_space<vmem>>, vector<8x128xf32>,
    return
  }
  func.func @transform_0(%arg0: i32, %arg1: i32) -> (i32, i32) {
    %c0_i32 = arith.constant 0 : i32
    return %arg0, %arg1 : i32, i32
  }
  func.func @transform_1(%arg0: i32, %arg1: i32) -> (i32, i32) {
    %c0_i32 = arith.constant 0 : i32
    return %arg0, %arg1 : i32, i32
  }
}

</mosaic_0001>

<llo_original>
// kernel: tpu_custom_call.1
$region0: #{tpu_custom_call.1}
  #allocation0 [shape = 'u32[]', space=smem, size = 0x4, offset = 0x4, fixed_abs, tag = 'smem constant byte address 0x4 - core index']
  #allocation1 [shape = 'u32[144,128]{1,0:T(1,128)}', space=vmem, size = 0x12000, scoped, tag = 'internal scratch']
  %s0 = inlined_call_operand.hbm [shape: f32[8,16], index: 0, kind: input, shape index: {}]
  %s1 = inlined_call_operand.hbm [shape: f32[8,15], index: 1, kind: output, shape index: {}]
  %s2 = sld [smem:[#allocation0]]
  $region18: #{tpu_custom_call.1} parent=0
    _
  %s4 = ssub.s32 1, %s2
  %s5 = scalar_select 0, %s4, %s2
  $region1: #{tpu_custom_call.1} parent=0
    #allocation2 [shape = 'u8[4096]{0}', space=vmem, size = 0x1000, scoped, tag = 'input window, operand 0, single buffered']
    #allocation3 [shape = 's32[1]{0}', space=sflag, size = 0x4, scoped, tag = 'scoped memory for tpu_custom_call.1']
    #allocation4 [shape = 's32[1]{0}', space=sflag, size = 0x4, scoped, tag = 'scoped memory for tpu_custom_call.1']
    #allocation5 [shape = 'u8[4096]{0}', space=vmem, size = 0x1000, scoped, tag = 'output window, operand 0, single buffered']
    %6 = vsyncpa [#allocation3], 0
    %7 = vsyncpa [#allocation4], 0
    // Predicated region
    $region2: #{tpu_custom_call.1} parent=1 // pred_check
      _
    $region3: #{tpu_custom_call.1} parent=1 // pred_check_branch
      %9 = sbr.rel (0) target = $region5
    $region4: #{tpu_custom_call.1} parent=1 // pred_region
      %s11 = ssub.s32 128, 128
      %12 = vsyncadd [#allocation3], %s11
      %s14 = sshll.u32 [#allocation2], 4
      %s15 = int_to_ptr.vmem [resolvable:$true] %s14
      %17 = dma.hbm_to_vmem [thread:$0]  %s0, 128, %s15, [#allocation3]
    $region5: #{tpu_custom_call.1} parent=1 // pred_fallthru
      _
    // Predicated region
    $region6: #{tpu_custom_call.1} parent=1 // pred_check
      _
    $region7: #{tpu_custom_call.1} parent=1 // pred_check_branch
      %19 = sbr.rel (0) target = $region9
    $region8: #{tpu_custom_call.1} parent=1 // pred_region
      %20 = dma.done [#allocation3], 128
    $region9: #{tpu_custom_call.1} parent=1 // pred_fallthru
      _
    %v21 = vld [vmem:[#allocation2] sm:$0xff]
    %22 = vst [vmem:[#allocation5] sm:$0xff] %v21
    // Predicated region
    $region10: #{tpu_custom_call.1} parent=1 // pred_check
      _
    $region11: #{tpu_custom_call.1} parent=1 // pred_check_branch
      %24 = sbr.rel (0) target = $region13
    $region12: #{tpu_custom_call.1} parent=1 // pred_region
      %s26 = ssub.s32 128, 128
      %27 = vsyncadd [#allocation4], %s26
      %s29 = sshll.u32 [#allocation5], 4
      %s30 = int_to_ptr.vmem [resolvable:$true] %s29
      %32 = dma.vmem_to_hbm [thread:$0]  %s30, 128, %s1, [#allocation4]
    $region13: #{tpu_custom_call.1} parent=1 // pred_fallthru
      _
    // Predicated region
    $region14: #{tpu_custom_call.1} parent=1 // pred_check
      _
    $region15: #{tpu_custom_call.1} parent=1 // pred_check_branch
      %34 = sbr.rel (0) target = $region17
    $region16: #{tpu_custom_call.1} parent=1 // pred_region
      %35 = dma.done [#allocation4], 128
    $region17: #{tpu_custom_call.1} parent=1 // pred_fallthru
      _
    %36 = vsyncpa [#allocation3], 1
    %37 = vsyncpa [#allocation4], 1

</llo_original>
